<compile_context>
chip_gen: v7x
topology: tpu7x:2x2x1
jax: 0.10.0
libtpu: 0.0.40
codegen_flags: <defaults>
</compile_context>

<pallas_src>
import functools

import jax
import jax.numpy as jnp
from jax.experimental import pallas as pl
from jax.experimental.pallas import tpu as pltpu

EPS = 1e-12
# gigagan-pytorch's leaky_relu() helper uses the StyleGAN convention.
# TODO(synk): confirm the slope against the repo's leaky_relu() definition (the
# provided spec omits it); F.leaky_relu's bare default would be 0.01.
NEG_SLOPE = 0.2


def _cdiv(a, b):
    return -(-a // b)


def _round_up(n, m):
    return _cdiv(n, m) * m


def _pad2(a, rows, cols):
    r, c = a.shape
    if (r, c) == (rows, cols):
        return a
    return jnp.pad(a, ((0, rows - r), (0, cols - c)))


# --------------------------------------------------------------------------- #
# Kernel
# --------------------------------------------------------------------------- #
def _style_kernel(xt_ref, w0_ref, wh_ref, b_ref, out_ref, *, depth, dim_pad,
                  neg_slope):
    """xt_ref : (TB, dim_pad + dtl_pad)   activations [x | text], lane-padded
       w0_ref : (dim_pad + dtl_pad, dim_pad) bf16   first-layer weight
       wh_ref : (max(depth-1, 1), dim_pad, dim_pad) bf16   hidden layers stacked
       b_ref  : (depth, dim_pad) f32   biases stacked
       out_ref: (TB, dim_pad)
    """
    mm_dtype = w0_ref.dtype

    xt = xt_ref[...].astype(jnp.float32)
    # F.normalize(x, dim=1) applied only to the x lanes:
    #   x / max(||x||, eps) == x * rsqrt(max(sum(x*x), eps^2))
    # Padding lanes of x are zero; text lanes are excluded via the lane mask.
    lane = jax.lax.broadcasted_iota(jnp.int32, xt.shape, 1)
    is_x = lane < dim_pad
    sumsq = jnp.sum(jnp.where(is_x, xt * xt, 0.0), axis=-1, keepdims=True)
    inv = jax.lax.rsqrt(jnp.maximum(sumsq, EPS * EPS))
    xt = jnp.where(is_x, xt * inv, xt)

    biases = b_ref[...]  # (depth, dim_pad) f32, loaded once

    # Layer 0: one long-K MXU matmul over the lane-aligned [x | text] concat.
    h = jnp.dot(xt.astype(mm_dtype), w0_ref[...],
                preferred_element_type=jnp.float32) + biases[0:1, :]
    h = jnp.maximum(h, neg_slope * h)  # LeakyReLU

    # Hidden layers, statically unrolled (wh_ref[i] is a static index).
    for i in range(1, depth):
        h = jnp.dot(h.astype(mm_dtype), wh_ref[i - 1],
                    preferred_element_type=jnp.float32) + biases[i:i + 1, :]
        h = jnp.maximum(h, neg_slope * h)

    out_ref[...] = h.astype(out_ref.dtype)


# --------------------------------------------------------------------------- #
# One-time parameter preprocessing (hoisted out of the per-call path)
# --------------------------------------------------------------------------- #
def prep_style_params(weights, biases, lr_mul, dim, dim_text_latent,
                      param_dtype=jnp.bfloat16):
    """weights[i]: (dim, dim_in_i) PyTorch layout, biases[i]: (dim,).

    Returns (w0, wh, bs) with lr_mul folded in:
      w0: (dim_pad + dtl_pad, dim_pad) param_dtype
      wh: (max(depth-1, 1), dim_pad, dim_pad) param_dtype
      bs: (depth, dim_pad) float32
    """
    # TODO(synk): int8 (v5e/v6e) / fp8-e4m3 (v7x) weight variants with per-channel
    # scales for the small-batch, weight-DMA-bound regime.
    depth = len(weights)
    dim_pad = _round_up(dim, 128)
    dtl_pad = _round_up(dim_text_latent, 128) if dim_text_latent > 0 else 0

    # First layer: split at the x/text boundary, pad each piece to 128 lanes,
    # then restack -> a single weight that the padded [x | text] concat multiplies.
    w0 = jnp.asarray(weights[0], jnp.float32) * lr_mul            # (dim, dim+dtl)
    wx = _pad2(w0[:, :dim].T, dim_pad, dim_pad)
    if dim_text_latent > 0:
        wt = _pad2(w0[:, dim:].T, dtl_pad, dim_pad)
        w0p = jnp.concatenate([wx, wt], axis=0)                   # (dim_pad+dtl_pad, dim_pad)
    else:
        w0p = wx
    w0p = w0p.astype(param_dtype)

    hidden = [_pad2((jnp.asarray(weights[i], jnp.float32) * lr_mul).T,
                    dim_pad, dim_pad) for i in range(1, depth)]
    if hidden:
        wh = jnp.stack(hidden, axis=0).astype(param_dtype)
    else:
        wh = jnp.zeros((1, dim_pad, dim_pad), param_dtype)        # never read (depth==1)

    bs = jnp.stack([jnp.pad(jnp.asarray(b, jnp.float32) * lr_mul,
                            (0, dim_pad - dim)) for b in biases], axis=0)
    return w0p, wh, bs


# --------------------------------------------------------------------------- #
# One-time capability probe + cached kernel builder
# --------------------------------------------------------------------------- #
@functools.lru_cache(maxsize=1)
def _buffered1_supported():
    """Feature-detect pl.Buffered(1) (single-buffered resident operands) once,
    with a tiny isolated kernel so real lowering errors are never swallowed."""
    try:
        def _k(a_ref, w_ref, o_ref):
            o_ref[...] = a_ref[...] + w_ref[0]

        f = pl.pallas_call(
            _k,
            out_shape=jax.ShapeDtypeStruct((8, 128), jnp.float32),
            grid=(1,),
            in_specs=[
                pl.BlockSpec((8, 128), lambda i: (i, 0)),
                pl.BlockSpec((1, 8, 128), lambda i: (0, 0, 0),
                             pipeline_mode=pl.Buffered(1)),
            ],
            out_specs=pl.BlockSpec((8, 128), lambda i: (i, 0)),
        )
        jax.block_until_ready(
            f(jnp.zeros((8, 128), jnp.float32), jnp.ones((1, 8, 128), jnp.float32)))
        return True
    except Exception:
        return False


def _physical_vmem_bytes():
    try:
        return int(pltpu.get_tpu_info().vmem_capacity_bytes)
    except Exception:
        return 64 << 20  # v7x floor: the most conservative valid assumption


def _vmem_limit_bytes(param_bytes, act_bytes, single_buffer):
    resident = param_bytes * (1 if single_buffer else 2)
    pipelined = 2 * act_bytes                  # double-buffered input + output tiles
    need = resident + pipelined + (4 << 20)    # compiler scratch / spill headroom
    cap = max(_physical_vmem_bytes() - (8 << 20), 16 << 20)
    # TODO(synk): if need > cap (very large dim/depth on v7x), stream weights per
    # layer (layer grid axis / pltpu.emit_pipeline) instead of keeping all resident.
    return int(min(max(need, 32 << 20), cap))


@functools.lru_cache(maxsize=None)
def _build_style_call(B_pad, TB, dim_pad, din_pad, depth, wh_layers,
                      param_dtype, x_dtype, out_dtype, single_buffer):
    param_dt = jnp.dtype(param_dtype)
    x_dt = jnp.dtype(x_dtype)
    out_dt = jnp.dtype(out_dtype)

    kernel = functools.partial(_style_kernel, depth=depth, dim_pad=dim_pad,
                               neg_slope=NEG_SLOPE)
    pkw = {"pipeline_mode": pl.Buffered(1)} if single_buffer else {}

    param_bytes = ((din_pad * dim_pad + wh_layers * dim_pad * dim_pad)
                   * param_dt.itemsize + depth * dim_pad * 4)
    act_bytes = TB * din_pad * x_dt.itemsize + TB * dim_pad * out_dt.itemsize

    return pl.pallas_call(
        kernel,
        out_shape=jax.ShapeDtypeStruct((B_pad, dim_pad), out_dt),
        grid=(B_pad // TB,),
        in_specs=[
            pl.BlockSpec((TB, din_pad), lambda i: (i, 0)),
            pl.BlockSpec((din_pad, dim_pad), lambda i: (0, 0), **pkw),
            pl.BlockSpec((wh_layers, dim_pad, dim_pad), lambda i: (0, 0, 0), **pkw),
            pl.BlockSpec((depth, dim_pad), lambda i: (0, 0), **pkw),
        ],
        out_specs=pl.BlockSpec((TB, dim_pad), lambda i: (i, 0)),
        compiler_params=pltpu.CompilerParams(
            dimension_semantics=("parallel",),
            vmem_limit_bytes=_vmem_limit_bytes(param_bytes, act_bytes, single_buffer),
        ),
    )


# --------------------------------------------------------------------------- #
# Forward
# --------------------------------------------------------------------------- #
def _choose_tiles(B, tile_b):
    """Minimize batch-padding waste; force >=2 grid steps for large batches so
    the 'parallel' grid axis can shard across both v7x TensorCores."""
    n_tiles = _cdiv(B, tile_b)
    if B >= 256:  # compute-bound enough that duplicated resident-weight DMA amortizes
        n_tiles = max(n_tiles, 2)
    TB = _round_up(_cdiv(B, n_tiles), 8)
    return TB, n_tiles * TB


@functools.partial(jax.jit, static_argnames=("tile_b", "out_dtype", "single_buffer"))
def _forward_impl(x, t, w0, wh, bs, *, tile_b, out_dtype, single_buffer):
    B, dim = x.shape
    din_pad, dim_pad = w0.shape
    dtl_pad = din_pad - dim_pad
    depth = bs.shape[0]

    TB, B_pad = _choose_tiles(B, tile_b)

    # Zero lane-padding keeps the L2 norm exact; the [x | text] concat is 128-lane
    # aligned and stays outside the kernel (fused with the pads by XLA under jit).
    xp = _pad2(x, B_pad, dim_pad)
    if dtl_pad > 0:
        xt = jnp.concatenate([xp, _pad2(t, B_pad, dtl_pad)], axis=-1)
    else:
        xt = xp

    call = _build_style_call(B_pad, TB, dim_pad, din_pad, depth, wh.shape[0],
                             jnp.dtype(w0.dtype).name, jnp.dtype(xt.dtype).name,
                             out_dtype, single_buffer)
    return call(xt, w0, wh, bs)[:B, :dim]


def style_network_forward(x, text_latent, params, *, tile_b=256, out_dtype=None):
    """x: (B, dim); text_latent: (B, dim_text_latent) or None; params from
    prep_style_params. Returns (B, dim).

    tile_b: batch tile rows; 256 fits the v6e/v7x 256-wide MXU, sweep 128 on v5e.
    """
    w0, wh, bs = params
    x = jnp.asarray(x)
    out_name = jnp.dtype(out_dtype if out_dtype is not None else x.dtype).name
    if text_latent is None:
        text_latent = jnp.zeros((x.shape[0], 0), x.dtype)
    single_buffer = _buffered1_supported()  # cached one-time probe, done eagerly
    return _forward_impl(x, jnp.asarray(text_latent), w0, wh, bs,
                         tile_b=int(tile_b), out_dtype=out_name,
                         single_buffer=bool(single_buffer))


# --------------------------------------------------------------------------- #
# Pure-JAX reference (exact f32 semantics of the PyTorch module)
# --------------------------------------------------------------------------- #
def style_network_reference(x, text_latent, weights, biases, lr_mul):
    x = jnp.asarray(x, jnp.float32)
    norm = jnp.sqrt(jnp.sum(x * x, axis=1, keepdims=True))
    x = x / jnp.maximum(norm, EPS)
    h = x if text_latent is None else jnp.concatenate(
        [x, jnp.asarray(text_latent, jnp.float32)], axis=-1)
    for w, b in zip(weights, biases):
        h = h @ (jnp.asarray(w, jnp.float32) * lr_mul).T \
            + jnp.asarray(b, jnp.float32) * lr_mul
        h = jnp.where(h > 0, h, NEG_SLOPE * h)
    return h


if __name__ == "__main__":
    # Config 1: small GigaGAN mapping net.
    B, dim, dim_text_latent, depth, lr_mul = 16, 32, 64, 2, 0.1
    key = jax.random.PRNGKey(0)
    kx, kt, *kws = jax.random.split(key, 2 + depth)
    x = jax.random.normal(kx, (B, dim), dtype=jnp.float32)
    text_latent = jax.random.normal(kt, (B, dim_text_latent), dtype=jnp.float32)

    weights, biases = [], []
    for i in range(depth):
        dim_in = dim + dim_text_latent if i == 0 else dim
        weights.append(jax.random.normal(kws[i], (dim, dim_in), dtype=jnp.float32))
        biases.append(0.01 * jnp.arange(dim, dtype=jnp.float32))  # non-zero bias path

    params = prep_style_params(weights, biases, lr_mul, dim, dim_text_latent)
    out = jax.block_until_ready(style_network_forward(x, text_latent, params))
    ref = style_network_reference(x, text_latent, weights, biases, lr_mul)
    assert out.shape == (B, dim)
    assert jnp.allclose(out, ref, atol=3e-2, rtol=3e-2), "mismatch vs reference"

    # Config 2: ragged batch forcing a multi-step grid (batch padding path).
    B2 = 20
    x2 = jax.random.normal(jax.random.PRNGKey(1), (B2, dim), dtype=jnp.float32)
    t2 = jax.random.normal(jax.random.PRNGKey(2), (B2, dim_text_latent),
                           dtype=jnp.float32)
    out2 = jax.block_until_ready(style_network_forward(x2, t2, params, tile_b=8))
    ref2 = style_network_reference(x2, t2, weights, biases, lr_mul)
    assert out2.shape == (B2, dim)
    assert jnp.allclose(out2, ref2, atol=3e-2, rtol=3e-2), "mismatch (tiled) vs reference"

    # Config 3: dim_text_latent == 0, depth == 1 (no-concat / no-hidden-layer path).
    w3 = [jax.random.normal(jax.random.PRNGKey(3), (dim, dim), dtype=jnp.float32)]
    b3 = [jnp.zeros((dim,), jnp.float32)]
    params3 = prep_style_params(w3, b3, lr_mul, dim, 0)
    out3 = jax.block_until_ready(style_network_forward(x, None, params3))
    ref3 = style_network_reference(x, None, w3, b3, lr_mul)
    assert out3.shape == (B, dim)
    assert jnp.allclose(out3, ref3, atol=3e-2, rtol=3e-2), "mismatch (dtl=0) vs reference"

    print("KERNEL_OK")
</pallas_src>

<mosaic_0001>
module attributes {stable_mosaic.version = 11 : i64} {
  func.func @_k(%arg0: i32, %arg1: memref<8x128xf32, #tpu.memory_space<vmem>>, %arg2: memref<1x8x128xf32, #tpu.memory_space<vmem>>, %arg3: memref<8x128xf32, #tpu.memory_space<vmem>>) attributes {dimension_semantics = [#tpu.dimension_semantics<arbitrary>], iteration_bounds = array<i64: 1>, scalar_prefetch = 0 : i64, scratch_operands = 0 : i64, tpu.core_type = #tpu.core_type<tc>, window_params = [{transform_indices = @transform_0, window_bounds = array<i64: 8, 128>}, {pipeline_mode = #tpu.pipeline_mode<synchronous>, transform_indices = @transform_1, window_bounds = array<i64: 1, 8, 128>}, {transform_indices = @transform_2, window_bounds = array<i64: 8, 128>}]} {
    %c0 = arith.constant 0 : index
    %c0_0 = arith.constant 0 : index
    %0 = vector.load %arg1[%c0, %c0_0] : memref<8x128xf32, #tpu.memory_space<vmem>>, vector<8x128xf32>
    %c0_1 = arith.constant 0 : index
    %c0_2 = arith.constant 0 : index
    %c0_3 = arith.constant 0 : index
    %1 = vector.load %arg2[%c0_1, %c0_2, %c0_3] : memref<1x8x128xf32, #tpu.memory_space<vmem>>, vector<1x8x128xf32>
    %2 = vector.shape_cast %1 : vector<1x8x128xf32> to vector<8x128xf32>
    %3 = arith.addf %0, %2 : vector<8x128xf32>
    %c0_4 = arith.constant 0 : index
    %c0_5 = arith.constant 0 : index
    %4 = vector.load %arg3[%c0_4, %c0_5] : memref<8x128xf32, #tpu.memory_space<vmem>>, vector<8x128xf32>
    tpu.vector_store %arg3[%c0_4, %c0_5], %3 {strides = array<i32>} : memref<8x128xf32, #tpu.memory_space<vmem>>, vector<8x128xf32>,
    return
  }
  func.func @transform_0(%arg0: i32) -> (i32, i32) {
    %c0_i32 = arith.constant 0 : i32
    %c0_i32_0 = arith.constant 0 : i32
    return %arg0, %c0_i32 : i32, i32
  }
  func.func @transform_1(%arg0: i32) -> (i32, i32, i32) {
    %c0_i32 = arith.constant 0 : i32
    %c0_i32_0 = arith.constant 0 : i32
    %c0_i32_1 = arith.constant 0 : i32
    %c0_i32_2 = arith.constant 0 : i32
    return %c0_i32, %c0_i32_0, %c0_i32_1 : i32, i32, i32
  }
  func.func @transform_2(%arg0: i32) -> (i32, i32) {
    %c0_i32 = arith.constant 0 : i32
    %c0_i32_0 = arith.constant 0 : i32
    return %arg0, %c0_i32 : i32, i32
  }
}

module attributes {stable_mosaic.version = 11 : i64} {
  func.func @_style_kernel(%arg0: i32, %arg1: memref<16x256xf32, #tpu.memory_space<vmem>>, %arg2: memref<256x128xbf16, #tpu.memory_space<vmem>>, %arg3: memref<1x128x128xbf16, #tpu.memory_space<vmem>>, %arg4: memref<2x128xf32, #tpu.memory_space<vmem>>, %arg5: memref<16x128xf32, #tpu.memory_space<vmem>>) attributes {dimension_semantics = [#tpu.dimension_semantics<parallel>], iteration_bounds = array<i64: 1>, scalar_prefetch = 0 : i64, scratch_operands = 0 : i64, tpu.core_type = #tpu.core_type<tc>, window_params = [{transform_indices = @transform_0, window_bounds = array<i64: 16, 256>}, {pipeline_mode = #tpu.pipeline_mode<synchronous>, transform_indices = @transform_1, window_bounds = array<i64: 256, 128>}, {pipeline_mode = #tpu.pipeline_mode<synchronous>, transform_indices = @transform_2, window_bounds = array<i64: 1, 128, 128>}, {pipeline_mode = #tpu.pipeline_mode<synchronous>, transform_indices = @transform_3, window_bounds = array<i64: 2, 128>}, {transform_indices = @transform_4, window_bounds = array<i64: 16, 128>}]} {
    %c0 = arith.constant 0 : index
    %c0_0 = arith.constant 0 : index
    %0 = vector.load %arg1[%c0, %c0_0] : memref<16x256xf32, #tpu.memory_space<vmem>>, vector<16x256xf32>
    %1 = tpu.iota {dimensions = array<i32: 1>} : vector<16x256xi32>
    %c128_i32 = arith.constant 128 : i32
    %2 = vector.broadcast %c128_i32 : i32 to vector<16x256xi32>
    %3 = arith.cmpi slt, %1, %2 : vector<16x256xi32>
    %4 = arith.mulf %0, %0 : vector<16x256xf32>
    %cst = arith.constant 0.000000e+00 : f32
    %5 = vector.broadcast %cst : f32 to vector<16x256xf32>
    %6 = arith.select %3, %4, %5 : vector<16x256xi1>, vector<16x256xf32>
    %cst_1 = arith.constant dense<0.000000e+00> : vector<16xf32>
    %7 = vector.multi_reduction <add>, %6, %cst_1 [1] : vector<16x256xf32> to vector<16xf32>
    %8 = vector.shape_cast %7 : vector<16xf32> to vector<16x1xf32>
    %cst_2 = arith.constant 1.000000e-24 : f32
    %9 = vector.broadcast %cst_2 : f32 to vector<16x1xf32>
    %10 = arith.maximumf %8, %9 : vector<16x1xf32>
    %11 = math.rsqrt %10 : vector<16x1xf32>
    %12 = vector.broadcast %11 : vector<16x1xf32> to vector<16x256xf32>
    %13 = arith.mulf %0, %12 : vector<16x256xf32>
    %14 = arith.select %3, %13, %0 : vector<16x256xi1>, vector<16x256xf32>
    %c0_3 = arith.constant 0 : index
    %c0_4 = arith.constant 0 : index
    %15 = vector.load %arg4[%c0_3, %c0_4] : memref<2x128xf32, #tpu.memory_space<vmem>>, vector<2x128xf32>
    %16 = arith.truncf %14 : vector<16x256xf32> to vector<16x256xbf16>
    %c0_5 = arith.constant 0 : index
    %c0_6 = arith.constant 0 : index
    %17 = vector.load %arg2[%c0_5, %c0_6] : memref<256x128xbf16, #tpu.memory_space<vmem>>, vector<256x128xbf16>
    %cst_7 = arith.constant dense<0.000000e+00> : vector<16x128xf32>
    %18 = tpu.matmul %16, %17, %cst_7 {dimension_numbers = #tpu.dot_dimension_numbers<[1], [0], [0], [1], [0, 0, 1, 1], [], []>} : vector<16x256xbf16>, vector<256x128xbf16>, vector<16x128xf32> -> vector<16x128xf32>
    %19 = vector.extract_strided_slice %15 {offsets = [0, 0], sizes = [1, 128], strides = [1, 1]} : vector<2x128xf32> to vector<1x128xf32>
    %20 = vector.broadcast %19 : vector<1x128xf32> to vector<16x128xf32>
    %21 = arith.addf %18, %20 : vector<16x128xf32>
    %cst_8 = arith.constant 2.000000e-01 : f32
    %22 = vector.broadcast %cst_8 : f32 to vector<16x128xf32>
    %23 = arith.mulf %22, %21 : vector<16x128xf32>
    %24 = arith.maximumf %21, %23 : vector<16x128xf32>
    %25 = arith.truncf %24 : vector<16x128xf32> to vector<16x128xbf16>
    %c0_9 = arith.constant 0 : index
    %c0_10 = arith.constant 0 : index
    %c0_11 = arith.constant 0 : index
    %26 = vector.load %arg3[%c0_9, %c0_10, %c0_11] : memref<1x128x128xbf16, #tpu.memory_space<vmem>>, vector<1x128x128xbf16>
    %27 = vector.shape_cast %26 : vector<1x128x128xbf16> to vector<128x128xbf16>
    %cst_12 = arith.constant dense<0.000000e+00> : vector<16x128xf32>
    %28 = tpu.matmul %25, %27, %cst_12 {dimension_numbers = #tpu.dot_dimension_numbers<[1], [0], [0], [1], [0, 0, 1, 1], [], []>} : vector<16x128xbf16>, vector<128x128xbf16>, vector<16x128xf32> -> vector<16x128xf32>
    %29 = vector.extract_strided_slice %15 {offsets = [1, 0], sizes = [1, 128], strides = [1, 1]} : vector<2x128xf32> to vector<1x128xf32>
    %30 = vector.broadcast %29 : vector<1x128xf32> to vector<16x128xf32>
    %31 = arith.addf %28, %30 : vector<16x128xf32>
    %cst_13 = arith.constant 2.000000e-01 : f32
    %32 = vector.broadcast %cst_13 : f32 to vector<16x128xf32>
    %33 = arith.mulf %32, %31 : vector<16x128xf32>
    %34 = arith.maximumf %31, %33 : vector<16x128xf32>
    %c0_14 = arith.constant 0 : index
    %c0_15 = arith.constant 0 : index
    %35 = vector.load %arg5[%c0_14, %c0_15] : memref<16x128xf32, #tpu.memory_space<vmem>>, vector<16x128xf32>
    tpu.vector_store %arg5[%c0_14, %c0_15], %34 {strides = array<i32>} : memref<16x128xf32, #tpu.memory_space<vmem>>, vector<16x128xf32>,
    return
  }
  func.func @transform_0(%arg0: i32) -> (i32, i32) {
    %c0_i32 = arith.constant 0 : i32
    %c0_i32_0 = arith.constant 0 : i32
    return %arg0, %c0_i32 : i32, i32
  }
  func.func @transform_1(%arg0: i32) -> (i32, i32) {
    %c0_i32 = arith.constant 0 : i32
    %c0_i32_0 = arith.constant 0 : i32
    %c0_i32_1 = arith.constant 0 : i32
    return %c0_i32, %c0_i32_0 : i32, i32
  }
  func.func @transform_2(%arg0: i32) -> (i32, i32, i32) {
    %c0_i32 = arith.constant 0 : i32
    %c0_i32_0 = arith.constant 0 : i32
    %c0_i32_1 = arith.constant 0 : i32
    %c0_i32_2 = arith.constant 0 : i32
    return %c0_i32, %c0_i32_0, %c0_i32_1 : i32, i32, i32
  }
  func.func @transform_3(%arg0: i32) -> (i32, i32) {
    %c0_i32 = arith.constant 0 : i32
    %c0_i32_0 = arith.constant 0 : i32
    %c0_i32_1 = arith.constant 0 : i32
    return %c0_i32, %c0_i32_0 : i32, i32
  }
  func.func @transform_4(%arg0: i32) -> (i32, i32) {
    %c0_i32 = arith.constant 0 : i32
    %c0_i32_0 = arith.constant 0 : i32
    return %arg0, %c0_i32 : i32, i32
  }
}

</mosaic_0001>

<llo_original>
// kernel: tpu_custom_call.1
$region0: #{tpu_custom_call.1}
  #allocation0 [shape = 'u32[]', space=smem, size = 0x4, offset = 0x4, fixed_abs, tag = 'smem constant byte address 0x4 - core index']
  #allocation1 [shape = 'u32[144,128]{1,0:T(1,128)}', space=vmem, size = 0x12000, scoped, tag = 'internal scratch']
  %s0 = inlined_call_operand.hbm [shape: f32[8,128], index: 0, kind: input, shape index: {}]
  %s1 = inlined_call_operand.hbm [shape: f32[1,8,128], index: 1, kind: input, shape index: {}]
  %s2 = inlined_call_operand.hbm [shape: f32[8,128], index: 2, kind: output, shape index: {}]
  %s3 = sld [smem:[#allocation0]]
  $region26: #{tpu_custom_call.1} parent=0
    _
  %s5 = ssub.s32 1, %s3
  %s6 = scalar_select 0, %s5, %s3
  $region1: #{tpu_custom_call.1} parent=0
    #allocation2 [shape = 'u8[4096]{0}', space=vmem, size = 0x1000, scoped, tag = 'input window, operand 0, single buffered']
    #allocation3 [shape = 's32[1]{0}', space=sflag, size = 0x4, scoped, tag = 'scoped memory for tpu_custom_call.1']
    #allocation4 [shape = 's32[1]{0}', space=sflag, size = 0x4, scoped, tag = 'scoped memory for tpu_custom_call.1']
    #allocation5 [shape = 'u8[4096]{0}', space=vmem, size = 0x1000, scoped, tag = 'input window, operand 1, single buffered']
    #allocation6 [shape = 's32[1]{0}', space=sflag, size = 0x4, scoped, tag = 'scoped memory for tpu_custom_call.1']
    #allocation7 [shape = 'u8[4096]{0}', space=vmem, size = 0x1000, scoped, tag = 'output window, operand 0, single buffered']
    %7 = vsyncpa [#allocation3], 0
    %8 = vsyncpa [#allocation6], 0
    %9 = vsyncpa [#allocation4], 0
    // Predicated region
    $region2: #{tpu_custom_call.1} parent=1 // pred_check
      _
    $region3: #{tpu_custom_call.1} parent=1 // pred_check_branch
      %11 = sbr.rel (0) target = $region5
    $region4: #{tpu_custom_call.1} parent=1 // pred_region
      %s13 = ssub.s32 128, 128
      %14 = vsyncadd [#allocation3], %s13
      %s16 = sshll.u32 [#allocation2], 4
      %s17 = int_to_ptr.vmem [resolvable:$true] %s16
      %19 = dma.hbm_to_vmem [thread:$0]  %s0, 128, %s17, [#allocation3]
    $region5: #{tpu_custom_call.1} parent=1 // pred_fallthru
      _
    // Predicated region
    $region6: #{tpu_custom_call.1} parent=1 // pred_check
      _
    $region7: #{tpu_custom_call.1} parent=1 // pred_check_branch
      %21 = sbr.rel (0) target = $region9
    $region8: #{tpu_custom_call.1} parent=1 // pred_region
      %s23 = ssub.s32 128, 128
      %24 = vsyncadd [#allocation6], %s23
      %s26 = sshll.u32 [#allocation5], 4
      %s27 = int_to_ptr.vmem [resolvable:$true] %s26
      %29 = dma.hbm_to_vmem [thread:$0]  %s1, 128, %s27, [#allocation6]
    $region9: #{tpu_custom_call.1} parent=1 // pred_fallthru
      _
    // Predicated region
    $region10: #{tpu_custom_call.1} parent=1 // pred_check
      _
    $region11: #{tpu_custom_call.1} parent=1 // pred_check_branch
      %31 = sbr.rel (0) target = $region13
    $region12: #{tpu_custom_call.1} parent=1 // pred_region
      %32 = dma.done [#allocation3], 128
    $region13: #{tpu_custom_call.1} parent=1 // pred_fallthru
      _
    // Predicated region
    $region14: #{tpu_custom_call.1} parent=1 // pred_check
      _
    $region15: #{tpu_custom_call.1} parent=1 // pred_check_branch
      %34 = sbr.rel (0) target = $region17
    $region16: #{tpu_custom_call.1} parent=1 // pred_region
      %35 = dma.done [#allocation6], 128
    $region17: #{tpu_custom_call.1} parent=1 // pred_fallthru
      _
    %v36 = vld [vmem:[#allocation2] sm:$0xff]
    %v37 = vld [vmem:[#allocation5] sm:$0xff]
    %v38 = vadd.f32 %v36, %v37
    %39 = vst [vmem:[#allocation7] sm:$0xff] %v38
    // Predicated region
    $region18: #{tpu_custom_call.1} parent=1 // pred_check
      _
    $region19: #{tpu_custom_call.1} parent=1 // pred_check_branch
      %41 = sbr.rel (0) target = $region21
    $region20: #{tpu_custom_call.1} parent=1 // pred_region
      %s43 = ssub.s32 128, 128
      %44 = vsyncadd [#allocation4], %s43
      %s46 = sshll.u32 [#allocation7], 4
      %s47 = int_to_ptr.vmem [resolvable:$true] %s46
      %49 = dma.vmem_to_hbm [thread:$0]  %s47, 128, %s2, [#allocation4]
    $region21: #{tpu_custom_call.1} parent=1 // pred_fallthru
      _
    // Predicated region
    $region22: #{tpu_custom_call.1} parent=1 // pred_check
      _
    $region23: #{tpu_custom_call.1} parent=1 // pred_check_branch
      %51 = sbr.rel (0) target = $region25
    $region24: #{tpu_custom_call.1} parent=1 // pred_region
      %52 = dma.done [#allocation4], 128
    $region25: #{tpu_custom_call.1} parent=1 // pred_fallthru
      _
    %53 = vsyncpa [#allocation3], 1
    %54 = vsyncpa [#allocation6], 1
    %55 = vsyncpa [#allocation4], 1

// kernel: _forward_impl.1
$region0: #{_forward_impl.1}
  #allocation0 [shape = 'u32[]', space=smem, size = 0x4, offset = 0x4, fixed_abs, tag = 'smem constant byte address 0x4 - core index']
  #allocation1 [shape = 'u32[144,128]{1,0:T(1,128)}', space=vmem, size = 0x12000, scoped, tag = 'internal scratch']
  %s0 = inlined_call_operand.vmem [shape: f32[16,256], index: 0, kind: input, shape index: {}]
  %s1 = inlined_call_operand.hbm [shape: bf16[256,128], index: 1, kind: input, shape index: {}]
  %s2 = inlined_call_operand.vmem [shape: bf16[1,128,128], index: 2, kind: input, shape index: {}]
  %s3 = inlined_call_operand.vmem [shape: f32[2,128], index: 3, kind: input, shape index: {}]
  %s4 = inlined_call_operand.hbm [shape: f32[16,128], index: 4, kind: output, shape index: {}]
  %s5 = sld [smem:[#allocation0]]
  $region30: #{_forward_impl.1} parent=0
    _
  %s7 = ssub.s32 1, %s5
  %s8 = scalar_select 0, %s7, %s5
  $region1: #{_forward_impl.1} parent=0
    #allocation2 [shape = 'u8[65536]{0}', space=vmem, size = 0x10000, scoped, tag = 'input window, operand 1, single buffered']
    #allocation3 [shape = 's32[1]{0}', space=sflag, size = 0x4, scoped, tag = 'scoped memory for _forward_impl.1']
    #allocation4 [shape = 's32[1]{0}', space=sflag, size = 0x4, scoped, tag = 'scoped memory for _forward_impl.1']
    #allocation5 [shape = 'u8[8192]{0}', space=vmem, size = 0x2000, scoped, tag = 'output window, operand 0, single buffered']
    %9 = vsyncpa [#allocation3], 0
    %10 = vsyncpa [#allocation4], 0
    // Predicated region
    $region2: #{_forward_impl.1} parent=1 // pred_check
      _
    $region3: #{_forward_impl.1} parent=1 // pred_check_branch
      %12 = sbr.rel (0) target = $region5
    $region4: #{_forward_impl.1} parent=1 // pred_region
      _
    $region5: #{_forward_impl.1} parent=1 // pred_fallthru
      _
    // Predicated region
    $region6: #{_forward_impl.1} parent=1 // pred_check
      _
    $region7: #{_forward_impl.1} parent=1 // pred_check_branch
      %14 = sbr.rel (0) target = $region9
    $region8: #{_forward_impl.1} parent=1 // pred_region
      %s16 = ssub.s32 2048, 2048
      %17 = vsyncadd [#allocation3], %s16
      %s18 = sshll.u32 [#allocation2], 4
      %s19 = int_to_ptr.vmem [resolvable:$true] %s18
      %24 = dma.hbm_to_vmem [thread:$0]  %s1, 2048, %s19, [#allocation3], 64, 64, 4
    $region9: #{_forward_impl.1} parent=1 // pred_fallthru
      _
    // Predicated region
    $region10: #{_forward_impl.1} parent=1 // pred_check
      _
    $region11: #{_forward_impl.1} parent=1 // pred_check_branch
      %26 = sbr.rel (0) target = $region13
    $region12: #{_forward_impl.1} parent=1 // pred_region
      _
    $region13: #{_forward_impl.1} parent=1 // pred_fallthru
      _
    // Predicated region
    $region14: #{_forward_impl.1} parent=1 // pred_check
      _
    $region15: #{_forward_impl.1} parent=1 // pred_check_branch
      %28 = sbr.rel (0) target = $region17
    $region16: #{_forward_impl.1} parent=1 // pred_region
      _
    $region17: #{_forward_impl.1} parent=1 // pred_fallthru
      _
    // Predicated region
    $region18: #{_forward_impl.1} parent=1 // pred_check
      _
    $region19: #{_forward_impl.1} parent=1 // pred_check_branch
      %30 = sbr.rel (0) target = $region21
    $region20: #{_forward_impl.1} parent=1 // pred_region
      %31 = dma.done [#allocation3], 2048
    $region21: #{_forward_impl.1} parent=1 // pred_fallthru
      _
    %v33 = vld [vmem:[%s0] sm:$0xff]
    %v34 = vld [vmem:[%s0 + $0x8] sm:$0xff]
    %v35 = vld [vmem:[%s0 + $0x10] sm:$0xff]
    %v36 = vld [vmem:[%s0 + $0x18] sm:$0xff]
    %v37 = vlaneseq
    %v38 = vand.u32 %v37, 127
    %v39 = vadd.s32 %v38, 128
    %vm40 = vcmp.lt.s32.totalorder %v38, 128
    %vm41 = vcmp.lt.s32.totalorder %v39, 128
    %v42 = vmul.f32 %v33, %v33
    %v43 = vmul.f32 %v34, %v34
    %v44 = vmul.f32 %v35, %v35
    %v45 = vmul.f32 %v36, %v36
    %v46 = vsel %vm40, %v42, 0.0
    %v47 = vsel %vm41, %v43, 0.0
    %v48 = vsel %vm40, %v44, 0.0
    %v49 = vsel %vm41, %v45, 0.0
    %v50 = vadd.f32 %v46, %v47
    %51 = vadd.xlane.f32.xlu0 %v50
    %v52 = vpop.xlane.xlu0 %51
    %v53 = vadd.f32 %v48, %v49
    %54 = vadd.xlane.f32.xlu0 %v53
    %v55 = vpop.xlane.xlu0 %54
    %v56 = vmax.f32 %v52, 1e-24
    %v57 = vmax.f32 %v55, 1e-24
    %v58 = vrsqrt.pop %v56
    %v59 = vrsqrt.pop %v57
    %v60 = vmul.f32 %v33, %v58
    %v61 = vmul.f32 %v34, %v58
    %v62 = vmul.f32 %v35, %v59
    %v63 = vmul.f32 %v36, %v59
    %v64 = vsel %vm40, %v60, %v33
    %v65 = vsel %vm41, %v61, %v34
    %v66 = vsel %vm40, %v62, %v35
    %v67 = vsel %vm41, %v63, %v36
    %v68 = vld [vmem:[%s3] sm:$0x3]
    %v69 = vpack.c.bf16 %v66, %v64
    %v70 = vpack.c.bf16 %v67, %v65
    %v71 = vld [vmem:[#allocation2] sm:$0xf]
    %v72 = vld [vmem:[#allocation2 + $0x4] sm:$0xf]
    %v73 = vld [vmem:[#allocation2 + $0x8] sm:$0xf]
    %v74 = vld [vmem:[#allocation2 + $0xc] sm:$0xf]
    %v75 = vld [vmem:[#allocation2 + $0x10] sm:$0xf]
    %v76 = vld [vmem:[#allocation2 + $0x14] sm:$0xf]
    %v77 = vld [vmem:[#allocation2 + $0x18] sm:$0xf]
    %v78 = vld [vmem:[#allocation2 + $0x1c] sm:$0xf]
    %v79 = vld [vmem:[#allocation2 + $0x20] sm:$0xf]
    %v80 = vld [vmem:[#allocation2 + $0x24] sm:$0xf]
    %v81 = vld [vmem:[#allocation2 + $0x28] sm:$0xf]
    %v82 = vld [vmem:[#allocation2 + $0x2c] sm:$0xf]
    %v83 = vld [vmem:[#allocation2 + $0x30] sm:$0xf]
    %v84 = vld [vmem:[#allocation2 + $0x34] sm:$0xf]
    %v85 = vld [vmem:[#allocation2 + $0x38] sm:$0xf]
    %v86 = vld [vmem:[#allocation2 + $0x3c] sm:$0xf]
    %v87 = vld [vmem:[#allocation2 + $0x40] sm:$0xf]
    %v88 = vld [vmem:[#allocation2 + $0x44] sm:$0xf]
    %v89 = vld [vmem:[#allocation2 + $0x48] sm:$0xf]
    %v90 = vld [vmem:[#allocation2 + $0x4c] sm:$0xf]
    %v91 = vld [vmem:[#allocation2 + $0x50] sm:$0xf]
    %v92 = vld [vmem:[#allocation2 + $0x54] sm:$0xf]
    %v93 = vld [vmem:[#allocation2 + $0x58] sm:$0xf]
    %v94 = vld [vmem:[#allocation2 + $0x5c] sm:$0xf]
    %v95 = vld [vmem:[#allocation2 + $0x60] sm:$0xf]
    %v96 = vld [vmem:[#allocation2 + $0x64] sm:$0xf]
    %v97 = vld [vmem:[#allocation2 + $0x68] sm:$0xf]
    %v98 = vld [vmem:[#allocation2 + $0x6c] sm:$0xf]
    %v99 = vld [vmem:[#allocation2 + $0x70] sm:$0xf]
    %v100 = vld [vmem:[#allocation2 + $0x74] sm:$0xf]
    %v101 = vld [vmem:[#allocation2 + $0x78] sm:$0xf]
    %v102 = vld [vmem:[#allocation2 + $0x7c] sm:$0xf]
    %v103 = vlaneseq
    %v104 = vshrl.u32 %v103, 7
    %v105 = vsub.s32 0, %v104
    %v106 = vrot.slane %v68, %v105
    %v139 = vunpack.c.l.b16 %v71
    %v140 = vunpack.c.l.b16 %v72
    %v141 = vunpack.c.l.b16 %v73
    %v142 = vunpack.c.l.b16 %v74
    %v143 = vunpack.c.l.b16 %v75
    %v144 = vunpack.c.l.b16 %v76
    %v145 = vunpack.c.l.b16 %v77
    %v146 = vunpack.c.l.b16 %v78
    %v147 = vunpack.c.l.b16 %v79
    %v148 = vunpack.c.l.b16 %v80
    %v149 = vunpack.c.l.b16 %v81
    %v150 = vunpack.c.l.b16 %v82
    %v151 = vunpack.c.l.b16 %v83
    %v152 = vunpack.c.l.b16 %v84
    %v153 = vunpack.c.l.b16 %v85
    %v154 = vunpack.c.l.b16 %v86
    %v155 = vunpack.c.l.b16 %v87
    %v156 = vunpack.c.l.b16 %v88
    %v157 = vunpack.c.l.b16 %v89
    %v158 = vunpack.c.l.b16 %v90
    %v159 = vunpack.c.l.b16 %v91
    %v160 = vunpack.c.l.b16 %v92
    %v161 = vunpack.c.l.b16 %v93
    %v162 = vunpack.c.l.b16 %v94
    %v163 = vunpack.c.l.b16 %v95
    %v164 = vunpack.c.l.b16 %v96
    %v165 = vunpack.c.l.b16 %v97
    %v166 = vunpack.c.l.b16 %v98
    %v167 = vunpack.c.l.b16 %v99
    %v168 = vunpack.c.l.b16 %v100
    %v169 = vunpack.c.l.b16 %v101
    %v170 = vunpack.c.l.b16 %v102
    %v171 = vpack.c.b16 %v140, %v139
    %v172 = vpack.c.b16 %v142, %v141
    %v173 = vpack.c.b16 %v144, %v143
    %v174 = vpack.c.b16 %v146, %v145
    %v175 = vpack.c.b16 %v148, %v147
    %v176 = vpack.c.b16 %v150, %v149
    %v177 = vpack.c.b16 %v152, %v151
    %v178 = vpack.c.b16 %v154, %v153
    %v179 = vpack.c.b16 %v156, %v155
    %v180 = vpack.c.b16 %v158, %v157
    %v181 = vpack.c.b16 %v160, %v159
    %v182 = vpack.c.b16 %v162, %v161
    %v183 = vpack.c.b16 %v164, %v163
    %v184 = vpack.c.b16 %v166, %v165
    %v185 = vpack.c.b16 %v168, %v167
    %v186 = vpack.c.b16 %v170, %v169
    %203 = vmatprep.subr.bf16.mxu0 0
    %204 = vmatpush1.bf16.msra.mxu0 %v171
    %205 = vmatprep.subr.bf16.mxu0 0
    %206 = vmatpush1.bf16.msra.mxu0 %v172
    %207 = vmatprep.subr.bf16.mxu0 0
    %208 = vmatpush1.bf16.msra.mxu0 %v173
    %209 = vmatprep.subr.bf16.mxu0 0
    %210 = vmatpush1.bf16.msra.mxu0 %v174
    %211 = vmatprep.subr.bf16.mxu0 0
    %212 = vmatpush1.bf16.msra.mxu0 %v175
    %213 = vmatprep.subr.bf16.mxu0 0
    %214 = vmatpush1.bf16.msra.mxu0 %v176
    %215 = vmatprep.subr.bf16.mxu0 0
    %216 = vmatpush1.bf16.msra.mxu0 %v177
    %217 = vmatprep.subr.bf16.mxu0 0
    %218 = vmatpush1.bf16.msra.mxu0 %v178
    %219 = vmatprep.subr.bf16.mxu0 0
    %220 = vmatpush1.bf16.msra.mxu0 %v179
    %221 = vmatprep.subr.bf16.mxu0 0
    %222 = vmatpush1.bf16.msra.mxu0 %v180
    %223 = vmatprep.subr.bf16.mxu0 0
    %224 = vmatpush1.bf16.msra.mxu0 %v181
    %225 = vmatprep.subr.bf16.mxu0 0
    %226 = vmatpush1.bf16.msra.mxu0 %v182
    %227 = vmatprep.subr.bf16.mxu0 0
    %228 = vmatpush1.bf16.msra.mxu0 %v183
    %229 = vmatprep.subr.bf16.mxu0 0
    %230 = vmatpush1.bf16.msra.mxu0 %v184
    %231 = vmatprep.subr.bf16.mxu0 0
    %232 = vmatpush1.bf16.msra.mxu0 %v185
    %233 = vmatprep.subr.bf16.mxu0 0
    %234 = vmatpush1.bf16.msra.mxu0 %v186
    %235 = vmatprep.mubr.bf16.mxu0 %v70
    %236 = vmatmul.mubr.bf16.gmra.mrb[0].mxu0 %v69
    %v237 = vpop.f32.mrb[0].mxu0
    %v238 = vadd.f32 %v106, %v237
    %v239 = vpop.f32.mrb[0].mxu0
    %v240 = vpop.f32.mrb[0].mxu0
    %v241 = vadd.f32 %v106, %v240
    %v242 = vpop.f32.mrb[0].mxu0
    %243 = vdwg.mxu0
    %v244 = vmul.f32 %v238, 0.2
    %v245 = vmul.f32 %v241, 0.2
    %v246 = vmax.f32 %v238, %v244
    %v247 = vmax.f32 %v241, %v245
    %v248 = vpack.c.bf16 %v247, %v246
    %v249 = vld [vmem:[%s2] sm:$0xf]
    %v250 = vld [vmem:[%s2 + $0x4] sm:$0xf]
    %v251 = vld [vmem:[%s2 + $0x8] sm:$0xf]
    %v252 = vld [vmem:[%s2 + $0xc] sm:$0xf]
    %v253 = vld [vmem:[%s2 + $0x10] sm:$0xf]
    %v254 = vld [vmem:[%s2 + $0x14] sm:$0xf]
    %v255 = vld [vmem:[%s2 + $0x18] sm:$0xf]
    %v256 = vld [vmem:[%s2 + $0x1c] sm:$0xf]
    %v257 = vld [vmem:[%s2 + $0x20] sm:$0xf]
    %v258 = vld [vmem:[%s2 + $0x24] sm:$0xf]
    %v259 = vld [vmem:[%s2 + $0x28] sm:$0xf]
    %v260 = vld [vmem:[%s2 + $0x2c] sm:$0xf]
    %v261 = vld [vmem:[%s2 + $0x30] sm:$0xf]
    %v262 = vld [vmem:[%s2 + $0x34] sm:$0xf]
    %v263 = vld [vmem:[%s2 + $0x38] sm:$0xf]
    %v264 = vld [vmem:[%s2 + $0x3c] sm:$0xf]
    %v265 = vlaneseq
    %v266 = vshrl.u32 %v265, 7
    %v267 = vsub.s32 1, %v266
    %v268 = vrot.slane %v68, %v267
    %v285 = vunpack.c.l.b16 %v249
    %v286 = vunpack.c.l.b16 %v250
    %v287 = vunpack.c.l.b16 %v251
    %v288 = vunpack.c.l.b16 %v252
    %v289 = vunpack.c.l.b16 %v253
    %v290 = vunpack.c.l.b16 %v254
    %v291 = vunpack.c.l.b16 %v255
    %v292 = vunpack.c.l.b16 %v256
    %v293 = vunpack.c.l.b16 %v257
    %v294 = vunpack.c.l.b16 %v258
    %v295 = vunpack.c.l.b16 %v259
    %v296 = vunpack.c.l.b16 %v260
    %v297 = vunpack.c.l.b16 %v261
    %v298 = vunpack.c.l.b16 %v262
    %v299 = vunpack.c.l.b16 %v263
    %v300 = vunpack.c.l.b16 %v264
    %v301 = vpack.c.b16 %v286, %v285
    %v302 = vpack.c.b16 %v288, %v287
    %v303 = vpack.c.b16 %v290, %v289
    %v304 = vpack.c.b16 %v292, %v291
    %v305 = vpack.c.b16 %v294, %v293
    %v306 = vpack.c.b16 %v296, %v295
    %v307 = vpack.c.b16 %v298, %v297
    %v308 = vpack.c.b16 %v300, %v299
    %317 = vmatprep.subr.bf16.mxu0 0
    %318 = vmatpush1.bf16.msra.mxu0 %v301
    %319 = vmatprep.subr.bf16.mxu0 0
    %320 = vmatpush1.bf16.msra.mxu0 %v302
    %321 = vmatprep.subr.bf16.mxu0 0
    %322 = vmatpush1.bf16.msra.mxu0 %v303
    %323 = vmatprep.subr.bf16.mxu0 0
    %324 = vmatpush1.bf16.msra.mxu0 %v304
    %325 = vmatprep.subr.bf16.mxu0 0
    %326 = vmatpush1.bf16.msra.mxu0 %v305
    %327 = vmatprep.subr.bf16.mxu0 0
    %328 = vmatpush1.bf16.msra.mxu0 %v306
    %329 = vmatprep.subr.bf16.mxu0 0
    %330 = vmatpush1.bf16.msra.mxu0 %v307
    %331 = vmatprep.subr.bf16.mxu0 0
    %332 = vmatpush1.bf16.msra.mxu0 %v308
    %333 = vmatprep.subr.bf16.mxu0 0
    %334 = vmatpush1.bf16.msra.mxu0 0
    %335 = vmatprep.subr.bf16.mxu0 0
    %336 = vmatpush1.bf16.msra.mxu0 0
    %337 = vmatprep.subr.bf16.mxu0 0
    %338 = vmatpush1.bf16.msra.mxu0 0
    %339 = vmatprep.subr.bf16.mxu0 0
    %340 = vmatpush1.bf16.msra.mxu0 0
    %341 = vmatprep.subr.bf16.mxu0 0
    %342 = vmatpush1.bf16.msra.mxu0 0
    %343 = vmatprep.subr.bf16.mxu0 0
    %344 = vmatpush1.bf16.msra.mxu0 0
    %345 = vmatprep.subr.bf16.mxu0 0
    %346 = vmatpush1.bf16.msra.mxu0 0
    %347 = vmatprep.subr.bf16.mxu0 0
    %348 = vmatpush1.bf16.msra.mxu0 0
    %349 = vmatprep.mubr.bf16.mxu0 0
    %350 = vmatmul.mubr.bf16.gmra.mrb[0].mxu0 %v248
    %v351 = vpop.f32.mrb[0].mxu0
    %v352 = vadd.f32 %v268, %v351
    %v353 = vpop.f32.mrb[0].mxu0
    %v354 = vpop.f32.mrb[0].mxu0
    %v355 = vadd.f32 %v268, %v354
    %v356 = vpop.f32.mrb[0].mxu0
    %357 = vdwg.mxu0
    %v358 = vmul.f32 %v352, 0.2
    %v359 = vmul.f32 %v355, 0.2
    %v360 = vmax.f32 %v352, %v358
    %v361 = vmax.f32 %v355, %v359
    %362 = vst [vmem:[#allocation5] sm:$0xff] %v360
    %363 = vst [vmem:[#allocation5 + $0x8] sm:$0xff] %v361
    // Predicated region
    $region22: #{_forward_impl.1} parent=1 // pred_check
      _
    $region23: #{_forward_impl.1} parent=1 // pred_check_branch
      %365 = sbr.rel (0) target = $region25
    $region24: #{_forward_impl.1} parent=1 // pred_region
      %s367 = ssub.s32 256, 256
      %368 = vsyncadd [#allocation4], %s367
      %s369 = sshll.u32 [#allocation5], 4
      %s370 = int_to_ptr.vmem [resolvable:$true] %s369
      %375 = dma.vmem_to_hbm [thread:$0]  %s370, 256, %s4, [#allocation4], 128, 128, 8
    $region25: #{_forward_impl.1} parent=1 // pred_fallthru
      _
    // Predicated region
    $region26: #{_forward_impl.1} parent=1 // pred_check
      _
    $region27: #{_forward_impl.1} parent=1 // pred_check_branch
      %377 = sbr.rel (0) target = $region29
    $region28: #{_forward_impl.1} parent=1 // pred_region
      %378 = dma.done [#allocation4], 256
    $region29: #{_forward_impl.1} parent=1 // pred_fallthru
      _
    %379 = vsyncpa [#allocation3], 1
    %380 = vsyncpa [#allocation4], 1

</llo_original>
